<compile_context>
chip_gen: v7x
topology: tpu7x:2x2x1
jax: 0.10.0
libtpu: 0.0.40
codegen_flags: <defaults>
</compile_context>

<pallas_src>
import functools

import jax
import jax.numpy as jnp
from jax import lax
from jax.experimental import pallas as pl
from jax.experimental.pallas import tpu as pltpu

_EPS = 1e-8  # nn.CosineSimilarity default eps

_TM_MAX = 512
_TN_MAX = 512
_TK_MAX = 4096                      # full-H single k block for typical SimCSE H
_VMEM_BUDGET = 44 * 1024 * 1024     # headroom under v7x's 64 MiB per-TC VMEM


def _round_up(n: int, m: int) -> int:
    return ((n + m - 1) // m) * m


def _pick_tile(n: int, candidates) -> int:
    """Pick the tile from `candidates` minimizing padded size (ties -> larger)."""
    best_t, best_p = None, None
    for t in candidates:
        p = _round_up(n, t)
        if best_p is None or p < best_p or (p == best_p and t > best_t):
            best_t, best_p = t, p
    return best_t


def _sim_kernel(x_ref, y_ref, inv_nx_ref, inv_ny_ref, o_ref):
    # x_ref: (tm, tk), y_ref: (tn, tk), inv_nx_ref: (tm, 1), inv_ny_ref: (1, tn)
    # o_ref: (tm, tn) f32, VMEM-resident across the k axis (same block index).
    k = pl.program_id(2)
    nk = pl.num_programs(2)

    # Transpose-free NT contraction straight on the MXU, f32 accumulation.
    partial = lax.dot_general(
        x_ref[...], y_ref[...],
        dimension_numbers=(((1,), (1,)), ((), ())),
        preferred_element_type=jnp.float32,
    )

    @pl.when(k == 0)
    def _():
        o_ref[...] = partial

    @pl.when(k != 0)
    def _():
        o_ref[...] += partial

    @pl.when(k == nk - 1)
    def _():
        # Cheap epilogue: per-row / per-col inverse norms (1/temp already folded
        # into inv_nx), pure VPU broadcast multiplies.
        o_ref[...] = o_ref[...] * inv_nx_ref[...] * inv_ny_ref[...]


@functools.partial(jax.jit, static_argnums=(2, 3))
def similarity(x, y, temp: float, use_bf16_matmul: bool = True):
    """Pallas equivalent of Similarity(temp)(x, y) for the SimCSE call pattern.

    x: (Bx, 1, H) or (Bx, H)
    y: (1, By, H) or (By, H)
    returns: (Bx, By) cosine similarity / temp (float32)
    """
    if x.ndim == 3:
        x = x.reshape(-1, x.shape[-1])
    if y.ndim == 3:
        y = y.reshape(-1, y.shape[-1])

    Bx, H = x.shape
    By, Hy = y.shape
    assert H == Hy, "hidden dims must match"

    inv_temp = 1.0 / float(temp)

    # --- Hoisted norm precompute (f32, from the original-precision inputs). ---
    # Per-side clamp max(||.||^2, eps) is equivalent to the reference clamp
    # max(||x||*||y||, eps) except for genuinely (near-)zero-norm embeddings;
    # padded rows still output exact 0 because their inv-norm is padded with 0.
    xf = x.astype(jnp.float32)
    yf = y.astype(jnp.float32)
    inv_nx = lax.rsqrt(
        jnp.maximum(jnp.sum(xf * xf, axis=-1, keepdims=True), _EPS)
    ) * inv_temp                                                    # (Bx, 1)
    inv_ny = lax.rsqrt(
        jnp.maximum(jnp.sum(yf * yf, axis=-1), _EPS)
    )[None, :]                                                      # (1, By)

    # --- MXU operand dtype: bf16 with f32 accumulation for f32 inputs. ---
    if use_bf16_matmul and x.dtype == jnp.float32:
        x = x.astype(jnp.bfloat16)
    if use_bf16_matmul and y.dtype == jnp.float32:
        y = y.astype(jnp.bfloat16)

    x_bytes = jnp.dtype(x.dtype).itemsize
    y_bytes = jnp.dtype(y.dtype).itemsize
    min_bytes = min(x_bytes, y_bytes)
    sub = {4: 8, 2: 16, 1: 32}.get(min_bytes, 8)   # sublane multiple for tm

    # --- Tile selection (minimize padding, keep output lane-dense). ---
    if Bx <= 128:
        tm = _round_up(Bx, sub)
    else:
        tm = _pick_tile(Bx, (min(512, _TM_MAX), 256, 128))
    if By <= 128:
        tn = 128
    else:
        tn = _pick_tile(By, (min(512, _TN_MAX), 256, 128))
    tk = min(_round_up(H, 128), _TK_MAX)

    # Keep double-buffered tiles under the VMEM budget (per TensorCore).
    def _vmem_est(tk_):
        return (2 * tm * tk_ * x_bytes + 2 * tn * tk_ * y_bytes   # x/y tiles
                + 2 * tm * tn * 4                                 # f32 out tile
                + 2 * (tm + tn) * 4)                              # inv norms
    while _vmem_est(tk) > _VMEM_BUDGET and tk > 128:
        tk = max(128, _round_up(tk // 2, 128))

    Bxp = _round_up(Bx, tm)
    Byp = _round_up(By, tn)
    Hp = _round_up(H, tk)

    # v7x has 2 TensorCores: if the parallel (i, j) grid is 1x1, split a tile
    # so both cores get work (tn stays a multiple of 128, tm of `sub`).
    if (Bxp // tm) * (Byp // tn) == 1:
        if tn > 128:
            tn //= 2
            Byp = _round_up(By, tn)
        elif Bx > sub and tm > sub:
            tm = max(sub, _round_up((Bx + 1) // 2, sub))
            Bxp = _round_up(Bx, tm)

    # --- Zero padding (exact: padded rows/cols produce 0 and are sliced off).
    if (Bxp, Hp) != (Bx, H):
        x = jnp.pad(x, ((0, Bxp - Bx), (0, Hp - H)))
    if (Byp, Hp) != (By, H):
        y = jnp.pad(y, ((0, Byp - By), (0, Hp - H)))
    if Bxp != Bx:
        inv_nx = jnp.pad(inv_nx, ((0, Bxp - Bx), (0, 0)))
    if Byp != By:
        inv_ny = jnp.pad(inv_ny, ((0, 0), (0, Byp - By)))

    grid = (Bxp // tm, Byp // tn, Hp // tk)
    vmem_limit = int(min(48 << 20, max(16 << 20, 2 * _vmem_est(tk))))

    out = pl.pallas_call(
        _sim_kernel,
        out_shape=jax.ShapeDtypeStruct((Bxp, Byp), jnp.float32),
        grid_spec=pltpu.PrefetchScalarGridSpec(
            num_scalar_prefetch=0,
            grid=grid,
            in_specs=[
                # x panel: j-independent -> fetched once per i row when nk == 1.
                pl.BlockSpec((tm, tk), lambda i, j, k: (i, k)),
                pl.BlockSpec((tn, tk), lambda i, j, k: (j, k)),
                pl.BlockSpec((tm, 1), lambda i, j, k: (i, 0)),
                pl.BlockSpec((1, tn), lambda i, j, k: (0, j)),
            ],
            out_specs=pl.BlockSpec((tm, tn), lambda i, j, k: (i, j)),
        ),
        compiler_params=pltpu.CompilerParams(
            dimension_semantics=("parallel", "parallel", "arbitrary"),
            vmem_limit_bytes=vmem_limit,
        ),
    )(x, y, inv_nx, inv_ny)

    return out[:Bx, :By]


def _reference(x, y, temp):
    # Plain-JAX f32 reference matching nn.CosineSimilarity(dim=-1) broadcasting.
    xb = x if x.ndim == 3 else x[:, None, :]
    yb = y if y.ndim == 3 else y[None, :, :]
    xb = xb.astype(jnp.float32)
    yb = yb.astype(jnp.float32)
    dot = jnp.sum(xb * yb, axis=-1)
    nx = jnp.sqrt(jnp.sum(xb * xb, axis=-1))
    ny = jnp.sqrt(jnp.sum(yb * yb, axis=-1))
    return dot / jnp.maximum(nx * ny, _EPS) / temp


if __name__ == "__main__":
    key = jax.random.PRNGKey(0)
    k1, k2 = jax.random.split(key)

    B, H = 8, 32
    temp = 0.05  # SimCSE default temperature

    z1 = jax.random.normal(k1, (B, H), dtype=jnp.float32)
    z2 = jax.random.normal(k2, (B, H), dtype=jnp.float32)

    # SimCSE call pattern: sim(z1.unsqueeze(1), z2.unsqueeze(0)) -> (B, B)
    x = z1[:, None, :]   # (B, 1, H)
    y = z2[None, :, :]   # (1, B, H)

    out = similarity(x, y, temp)
    jax.block_until_ready(out)

    ref = _reference(x, y, temp)
    assert out.shape == (B, B)
    # bf16 MXU operands (f32 accumulation / f32 norms) + 1/temp amplification
    # -> tolerance sized for bf16 input rounding; semantics match the module.
    assert jnp.allclose(out, ref, atol=0.12, rtol=0.02), "mismatch vs reference"

    print("KERNEL_OK")
</pallas_src>

<mosaic_0001>
module attributes {stable_mosaic.version = 11 : i64} {
  func.func @_sim_kernel(%arg0: i32, %arg1: i32, %arg2: i32, %arg3: memref<16x128xbf16, #tpu.memory_space<vmem>>, %arg4: memref<128x128xbf16, #tpu.memory_space<vmem>>, %arg5: memref<16x1xf32, #tpu.memory_space<vmem>>, %arg6: memref<1x128xf32, #tpu.memory_space<vmem>>, %arg7: memref<16x128xf32, #tpu.memory_space<vmem>>) attributes {dimension_semantics = [#tpu.dimension_semantics<parallel>, #tpu.dimension_semantics<parallel>, #tpu.dimension_semantics<arbitrary>], iteration_bounds = array<i64: 1, 1, 1>, scalar_prefetch = 0 : i64, scratch_operands = 0 : i64, tpu.core_type = #tpu.core_type<tc>, window_params = [{transform_indices = @transform_0, window_bounds = array<i64: 16, 128>}, {transform_indices = @transform_1, window_bounds = array<i64: 128, 128>}, {transform_indices = @transform_2, window_bounds = array<i64: 16, 1>}, {transform_indices = @transform_3, window_bounds = array<i64: 1, 128>}, {transform_indices = @transform_4, window_bounds = array<i64: 16, 128>}]} {
    %c0 = arith.constant 0 : index
    %c0_0 = arith.constant 0 : index
    %0 = vector.load %arg3[%c0, %c0_0] : memref<16x128xbf16, #tpu.memory_space<vmem>>, vector<16x128xbf16>
    %c0_1 = arith.constant 0 : index
    %c0_2 = arith.constant 0 : index
    %1 = vector.load %arg4[%c0_1, %c0_2] : memref<128x128xbf16, #tpu.memory_space<vmem>>, vector<128x128xbf16>
    %cst = arith.constant dense<0.000000e+00> : vector<16x128xf32>
    %2 = tpu.matmul %0, %1, %cst {dimension_numbers = #tpu.dot_dimension_numbers<[1], [1], [0], [0], [0, 0, 1, 0], [], []>} : vector<16x128xbf16>, vector<128x128xbf16>, vector<16x128xf32> -> vector<16x128xf32>
    %c0_i32 = arith.constant 0 : i32
    %3 = arith.cmpi eq, %arg2, %c0_i32 : i32
    %4 = arith.extui %3 : i1 to i32
    %c0_i32_3 = arith.constant 0 : i32
    %5 = arith.cmpi ne, %4, %c0_i32_3 : i32
    scf.if %5 {
      %c0_8 = arith.constant 0 : index
      %c0_9 = arith.constant 0 : index
      %12 = vector.load %arg7[%c0_8, %c0_9] : memref<16x128xf32, #tpu.memory_space<vmem>>, vector<16x128xf32>
      tpu.vector_store %arg7[%c0_8, %c0_9], %2 {strides = array<i32>} : memref<16x128xf32, #tpu.memory_space<vmem>>, vector<16x128xf32>,
    } else {
    }
    %c0_i32_4 = arith.constant 0 : i32
    %6 = arith.cmpi ne, %arg2, %c0_i32_4 : i32
    %7 = arith.extui %6 : i1 to i32
    %c0_i32_5 = arith.constant 0 : i32
    %8 = arith.cmpi ne, %7, %c0_i32_5 : i32
    scf.if %8 {
      %c0_8 = arith.constant 0 : index
      %c0_9 = arith.constant 0 : index
      %12 = vector.load %arg7[%c0_8, %c0_9] : memref<16x128xf32, #tpu.memory_space<vmem>>, vector<16x128xf32>
      %13 = arith.addf %12, %2 : vector<16x128xf32>
      %c0_10 = arith.constant 0 : index
      %c0_11 = arith.constant 0 : index
      %14 = vector.load %arg7[%c0_10, %c0_11] : memref<16x128xf32, #tpu.memory_space<vmem>>, vector<16x128xf32>
      tpu.vector_store %arg7[%c0_10, %c0_11], %13 {strides = array<i32>} : memref<16x128xf32, #tpu.memory_space<vmem>>, vector<16x128xf32>,
    } else {
    }
    %c0_i32_6 = arith.constant 0 : i32
    %9 = arith.cmpi eq, %arg2, %c0_i32_6 : i32
    %10 = arith.extui %9 : i1 to i32
    %c0_i32_7 = arith.constant 0 : i32
    %11 = arith.cmpi ne, %10, %c0_i32_7 : i32
    scf.if %11 {
      %c0_8 = arith.constant 0 : index
      %c0_9 = arith.constant 0 : index
      %12 = vector.load %arg7[%c0_8, %c0_9] : memref<16x128xf32, #tpu.memory_space<vmem>>, vector<16x128xf32>
      %c0_10 = arith.constant 0 : index
      %c0_11 = arith.constant 0 : index
      %13 = vector.load %arg5[%c0_10, %c0_11] : memref<16x1xf32, #tpu.memory_space<vmem>>, vector<16x1xf32>
      %14 = vector.broadcast %13 : vector<16x1xf32> to vector<16x128xf32>
      %15 = arith.mulf %12, %14 : vector<16x128xf32>
      %c0_12 = arith.constant 0 : index
      %c0_13 = arith.constant 0 : index
      %16 = vector.load %arg6[%c0_12, %c0_13] : memref<1x128xf32, #tpu.memory_space<vmem>>, vector<1x128xf32>
      %17 = vector.broadcast %16 : vector<1x128xf32> to vector<16x128xf32>
      %18 = arith.mulf %15, %17 : vector<16x128xf32>
      %c0_14 = arith.constant 0 : index
      %c0_15 = arith.constant 0 : index
      %19 = vector.load %arg7[%c0_14, %c0_15] : memref<16x128xf32, #tpu.memory_space<vmem>>, vector<16x128xf32>
      tpu.vector_store %arg7[%c0_14, %c0_15], %18 {strides = array<i32>} : memref<16x128xf32, #tpu.memory_space<vmem>>, vector<16x128xf32>,
    } else {
    }
    return
  }
  func.func @transform_0(%arg0: i32, %arg1: i32, %arg2: i32) -> (i32, i32) {
    %c0_i32 = arith.constant 0 : i32
    return %arg0, %arg2 : i32, i32
  }
  func.func @transform_1(%arg0: i32, %arg1: i32, %arg2: i32) -> (i32, i32) {
    %c0_i32 = arith.constant 0 : i32
    return %arg1, %arg2 : i32, i32
  }
  func.func @transform_2(%arg0: i32, %arg1: i32, %arg2: i32) -> (i32, i32) {
    %c0_i32 = arith.constant 0 : i32
    %c0_i32_0 = arith.constant 0 : i32
    return %arg0, %c0_i32 : i32, i32
  }
  func.func @transform_3(%arg0: i32, %arg1: i32, %arg2: i32) -> (i32, i32) {
    %c0_i32 = arith.constant 0 : i32
    %c0_i32_0 = arith.constant 0 : i32
    return %c0_i32, %arg1 : i32, i32
  }
  func.func @transform_4(%arg0: i32, %arg1: i32, %arg2: i32) -> (i32, i32) {
    %c0_i32 = arith.constant 0 : i32
    return %arg0, %arg1 : i32, i32
  }
}

</mosaic_0001>

<llo_original>
// kernel: similarity.1
$region0: #{similarity.1}
  #allocation0 [shape = 'u32[]', space=smem, size = 0x4, offset = 0x4, fixed_abs, tag = 'smem constant byte address 0x4 - core index']
  #allocation1 [shape = 'u32[144,128]{1,0:T(1,128)}', space=vmem, size = 0x12000, scoped, tag = 'internal scratch']
  %s0 = inlined_call_operand.vmem [shape: bf16[16,128], index: 0, kind: input, shape index: {}]
  %s1 = inlined_call_operand.vmem [shape: bf16[128,128], index: 1, kind: input, shape index: {}]
  %s2 = inlined_call_operand.vmem [shape: f32[16,1], index: 2, kind: input, shape index: {}]
  %s3 = inlined_call_operand.vmem [shape: f32[1,128], index: 3, kind: input, shape index: {}]
  %s4 = inlined_call_operand.vmem [shape: f32[16,128], index: 4, kind: output, shape index: {}]
  %s5 = sld [smem:[#allocation0]]
  $region38: #{similarity.1} parent=0
    _
  %s7 = ssub.s32 1, %s5
  %s8 = scalar_select 0, %s7, %s5
  // Predicated region
  $region2: #{similarity.1} parent=0 // pred_check
    _
  $region3: #{similarity.1} parent=0 // pred_check_branch
    %10 = sbr.rel (0) target = $region5
  $region4: #{similarity.1} parent=0 // pred_region
    _
  $region5: #{similarity.1} parent=0 // pred_fallthru
    _
  // Predicated region
  $region6: #{similarity.1} parent=0 // pred_check
    _
  $region7: #{similarity.1} parent=0 // pred_check_branch
    %12 = sbr.rel (0) target = $region9
  $region8: #{similarity.1} parent=0 // pred_region
    _
  $region9: #{similarity.1} parent=0 // pred_fallthru
    _
  // Predicated region
  $region10: #{similarity.1} parent=0 // pred_check
    _
  $region11: #{similarity.1} parent=0 // pred_check_branch
    %14 = sbr.rel (0) target = $region13
  $region12: #{similarity.1} parent=0 // pred_region
    _
  $region13: #{similarity.1} parent=0 // pred_fallthru
    _
  // Predicated region
  $region14: #{similarity.1} parent=0 // pred_check
    _
  $region15: #{similarity.1} parent=0 // pred_check_branch
    %16 = sbr.rel (0) target = $region17
  $region16: #{similarity.1} parent=0 // pred_region
    _
  $region17: #{similarity.1} parent=0 // pred_fallthru
    _
  %v18 = vld [vmem:[%s0] sm:$0xf]
  %v19 = vld [vmem:[%s0 + $0x4] sm:$0xf]
  %v20 = vld [vmem:[%s1] sm:$0xf]
  %v21 = vld [vmem:[%s1 + $0x4] sm:$0xf]
  %v22 = vld [vmem:[%s1 + $0x8] sm:$0xf]
  %v23 = vld [vmem:[%s1 + $0xc] sm:$0xf]
  %v24 = vld [vmem:[%s1 + $0x10] sm:$0xf]
  %v25 = vld [vmem:[%s1 + $0x14] sm:$0xf]
  %v26 = vld [vmem:[%s1 + $0x18] sm:$0xf]
  %v27 = vld [vmem:[%s1 + $0x1c] sm:$0xf]
  %v28 = vld [vmem:[%s1 + $0x20] sm:$0xf]
  %v29 = vld [vmem:[%s1 + $0x24] sm:$0xf]
  %v30 = vld [vmem:[%s1 + $0x28] sm:$0xf]
  %v31 = vld [vmem:[%s1 + $0x2c] sm:$0xf]
  %v32 = vld [vmem:[%s1 + $0x30] sm:$0xf]
  %v33 = vld [vmem:[%s1 + $0x34] sm:$0xf]
  %v34 = vld [vmem:[%s1 + $0x38] sm:$0xf]
  %v35 = vld [vmem:[%s1 + $0x3c] sm:$0xf]
  %v38 = vunpack.c.l.b16 %v18
  %v39 = vunpack.c.l.b16 %v19
  %v40 = vpack.c.b16 %v39, %v38
  %v58 = vunpack.c.l.b16 %v20
  %v59 = vunpack.c.l.b16 %v21
  %v60 = vunpack.c.l.b16 %v22
  %v61 = vunpack.c.l.b16 %v23
  %v62 = vunpack.c.l.b16 %v24
  %v63 = vunpack.c.l.b16 %v25
  %v64 = vunpack.c.l.b16 %v26
  %v65 = vunpack.c.l.b16 %v27
  %v66 = vunpack.c.l.b16 %v28
  %v67 = vunpack.c.l.b16 %v29
  %v68 = vunpack.c.l.b16 %v30
  %v69 = vunpack.c.l.b16 %v31
  %v70 = vunpack.c.l.b16 %v32
  %v71 = vunpack.c.l.b16 %v33
  %v72 = vunpack.c.l.b16 %v34
  %v73 = vunpack.c.l.b16 %v35
  %v74 = vpack.c.b16 %v59, %v58
  %v75 = vpack.c.b16 %v61, %v60
  %v76 = vpack.c.b16 %v63, %v62
  %v77 = vpack.c.b16 %v65, %v64
  %v78 = vpack.c.b16 %v67, %v66
  %v79 = vpack.c.b16 %v69, %v68
  %v80 = vpack.c.b16 %v71, %v70
  %v81 = vpack.c.b16 %v73, %v72
  %90 = vmatprep.subr.bf16.mxu0 0
  %91 = vmatpush1.bf16.xpose.msra.mxu0 %v74
  %92 = vmatprep.subr.bf16.mxu0 0
  %93 = vmatpush1.bf16.xpose.msra.mxu0 %v75
  %94 = vmatprep.subr.bf16.mxu0 0
  %95 = vmatpush1.bf16.xpose.msra.mxu0 %v76
  %96 = vmatprep.subr.bf16.mxu0 0
  %97 = vmatpush1.bf16.xpose.msra.mxu0 %v77
  %98 = vmatprep.subr.bf16.mxu0 0
  %99 = vmatpush1.bf16.xpose.msra.mxu0 %v78
  %100 = vmatprep.subr.bf16.mxu0 0
  %101 = vmatpush1.bf16.xpose.msra.mxu0 %v79
  %102 = vmatprep.subr.bf16.mxu0 0
  %103 = vmatpush1.bf16.xpose.msra.mxu0 %v80
  %104 = vmatprep.subr.bf16.mxu0 0
  %105 = vmatpush1.bf16.xpose.msra.mxu0 %v81
  %106 = vmatprep.subr.bf16.mxu0 0
  %107 = vmatpush1.bf16.xpose.msra.mxu0 0
  %108 = vmatprep.subr.bf16.mxu0 0
  %109 = vmatpush1.bf16.xpose.msra.mxu0 0
  %110 = vmatprep.subr.bf16.mxu0 0
  %111 = vmatpush1.bf16.xpose.msra.mxu0 0
  %112 = vmatprep.subr.bf16.mxu0 0
  %113 = vmatpush1.bf16.xpose.msra.mxu0 0
  %114 = vmatprep.subr.bf16.mxu0 0
  %115 = vmatpush1.bf16.xpose.msra.mxu0 0
  %116 = vmatprep.subr.bf16.mxu0 0
  %117 = vmatpush1.bf16.xpose.msra.mxu0 0
  %118 = vmatprep.subr.bf16.mxu0 0
  %119 = vmatpush1.bf16.xpose.msra.mxu0 0
  %120 = vmatprep.subr.bf16.mxu0 0
  %121 = vmatpush1.bf16.xpose.msra.mxu0 0
  %122 = vmatprep.mubr.bf16.mxu0 0
  %123 = vmatmul.mubr.bf16.gmra.mrb[0].mxu0 %v40
  %v124 = vpop.f32.mrb[0].mxu0
  %v125 = vadd.f32 0.0, %v124
  %v126 = vpop.f32.mrb[0].mxu0
  %v127 = vpop.f32.mrb[0].mxu0
  %v128 = vadd.f32 0.0, %v127
  %v129 = vpop.f32.mrb[0].mxu0
  %130 = vdwg.mxu0
  %p131 = scmp.eq.s32.totalorder 0, 0
  // Predicated region
  $region18: #{similarity.1} parent=0 // pred_check
    %p132 = pneg %p131
  $region19: #{similarity.1} parent=0 // pred_check_branch
    %134 = sbr.rel (%p132) target = $region21
  $region20: #{similarity.1} parent=0 // pred_region
    %135 = vst [vmem:[%s4] sm:$0xff] %v125
    %136 = vst [vmem:[%s4 + $0x8] sm:$0xff] %v128
  $region21: #{similarity.1} parent=0 // pred_fallthru
    _
  %p137 = scmp.ne.s32.totalorder 0, 0
  // Predicated region
  $region22: #{similarity.1} parent=0 // pred_check
    %p138 = pneg %p137
  $region23: #{similarity.1} parent=0 // pred_check_branch
    %140 = sbr.rel (%p138) target = $region25
  $region24: #{similarity.1} parent=0 // pred_region
    %v141 = vld [vmem:[%s4] sm:$0xff]
    %v142 = vld [vmem:[%s4 + $0x8] sm:$0xff]
    %v143 = vadd.f32 %v141, %v125
    %v144 = vadd.f32 %v142, %v128
    %145 = vst [vmem:[%s4] sm:$0xff] %v143
    %146 = vst [vmem:[%s4 + $0x8] sm:$0xff] %v144
  $region25: #{similarity.1} parent=0 // pred_fallthru
    _
  // Predicated region
  $region26: #{similarity.1} parent=0 // pred_check
    %p147 = pneg %p131
  $region27: #{similarity.1} parent=0 // pred_check_branch
    %149 = sbr.rel (%p147) target = $region29
  $region28: #{similarity.1} parent=0 // pred_region
    %v150 = vld [vmem:[%s4] sm:$0xff]
    %v151 = vld [vmem:[%s4 + $0x8] sm:$0xff]
    %v152 = vld [vmem:[%s2] sm:$0xff]
    %v153 = vld [vmem:[%s2 + $0x8] sm:$0xff]
    %155 = vset.pattern.permute.xlu0 0
    %156 = vperm.xlu0 %155, %v152
    %v157 = vpop.permute.xlu0 %156
    %160 = vset.pattern.permute.xlu0 0
    %161 = vperm.xlu0 %160, %v153
    %v162 = vpop.permute.xlu0 %161
    %v164 = vmul.f32 %v150, %v157
    %v165 = vmul.f32 %v151, %v162
    %v166 = vld [vmem:[%s3] sm:$0x1]
    %v168 = vlaneseq
    %v169 = vshrl.u32 %v168, 7
    %v170 = vsub.s32 0, %v169
    %v171 = vrot.slane %v166, %v170
    %v173 = vmul.f32 %v164, %v171
    %v174 = vmul.f32 %v165, %v171
    %175 = vst [vmem:[%s4] sm:$0xff] %v173
    %176 = vst [vmem:[%s4 + $0x8] sm:$0xff] %v174
  $region29: #{similarity.1} parent=0 // pred_fallthru
    _
  // Predicated region
  $region30: #{similarity.1} parent=0 // pred_check
    _
  $region31: #{similarity.1} parent=0 // pred_check_branch
    %178 = sbr.rel (0) target = $region33
  $region32: #{similarity.1} parent=0 // pred_region
    _
  $region33: #{similarity.1} parent=0 // pred_fallthru
    _
  // Predicated region
  $region34: #{similarity.1} parent=0 // pred_check
    _
  $region35: #{similarity.1} parent=0 // pred_check_branch
    %180 = sbr.rel (0) target = $region37
  $region36: #{similarity.1} parent=0 // pred_region
    _
  $region37: #{similarity.1} parent=0 // pred_fallthru
    _

</llo_original>
